<compile_context>
chip_gen: v7x
topology: tpu7x:2x2x1
jax: 0.10.0
libtpu: 0.0.40
codegen_flags: <defaults>
</compile_context>

<pallas_src>
import jax
import jax.numpy as jnp
from jax.experimental import pallas as pl
from jax.experimental.pallas import tpu as pltpu


def _l2_norm_kernel(x_ref, o_ref):
    x32 = x_ref[...].astype(jnp.float32)                  # (tm, C) f32
    sq_sum = jnp.sum(x32 * x32, axis=1, keepdims=True)    # (tm, 1) f32 accumulation
    inv_norm = jax.lax.rsqrt(sq_sum)                       # EUP; no eps (matches torch)
    o_ref[...] = (x32 * inv_norm).astype(o_ref.dtype)      # single downcast at the store


def _vmem_capacity_bytes():
    """Best-effort query of per-core VMEM capacity; conservative fallback."""
    try:
        info = pltpu.get_tpu_info()
        cap = int(getattr(info, "vmem_capacity_bytes", 0))
        if cap > 0:
            return cap
    except Exception:
        pass
    return 64 * 1024 * 1024  # v7x per-TC VMEM; safe lower bound for v5e/v6e too


def _pick_row_tile(n, c, dtype, target_bytes):
    """Row tile: multiple of the sublane quantum, ~target_bytes of VMEM per block,
    with a grid-step count that is >= 2 (and preferably even for v7x) when N allows."""
    itemsize = jnp.dtype(dtype).itemsize
    sublane = max(8, 32 // itemsize)            # 8 (f32), 16 (bf16), 32 (int8)
    lane_c = pl.cdiv(max(c, 1), 128) * 128      # VMEM lane padding of the block
    row_bytes = lane_c * itemsize
    rows = max(sublane, (target_bytes // row_bytes) // sublane * sublane)

    n_pad = pl.cdiv(n, sublane) * sublane
    if rows >= n_pad:
        # One step would cover everything; split in two when possible so the
        # pipeline overlaps DMA with compute and v7x can shard across both TCs.
        if n_pad >= 2 * sublane:
            rows = pl.cdiv(n_pad, 2 * sublane) * sublane
        else:
            rows = n_pad
    else:
        # Round the step count up to an even number (v7x megacore balance) and
        # re-balance the tile so the last (masked) block is not mostly padding.
        steps = pl.cdiv(n, rows)
        if steps % 2:
            steps += 1
        rows = max(sublane, pl.cdiv(pl.cdiv(n, steps), sublane) * sublane)
    return rows


def l2_normalize(x, *, row_tile=None, target_block_bytes=None):
    """Row-wise L2 normalization of a 2D array, matching the PyTorch module."""
    if x.ndim != 2:
        raise ValueError("L2_normalization expects a 2D (N, C) input")
    n, c = x.shape

    capacity = _vmem_capacity_bytes()
    if target_block_bytes is None:
        # ~capacity/16 per block: 8 MiB on v5e/v6e, 4 MiB on v7x, never below 2 MiB.
        target_block_bytes = min(8 << 20, max(2 << 20, capacity // 16))
    if row_tile is None:
        row_tile = _pick_row_tile(n, c, x.dtype, target_block_bytes)

    # Explicit scoped-VMEM limit: 2 in + 2 out double-buffered blocks plus
    # compiler scratch fit comfortably (32 MiB on v7x, 64 MiB on v5e/v6e).
    vmem_limit = int(min(64 << 20, max(32 << 20, capacity // 2)))

    grid = (pl.cdiv(n, row_tile),)   # partial last block is masked by Pallas

    # TODO(synk): for C < 128 the output stores are lane-masked (vst.msk); a
    # lane-dense row-packing ((N, C) -> (N/g, g*C)) would fix that, but for a
    # standalone call it costs an extra relayout pass through HBM, so skipped.
    return pl.pallas_call(
        _l2_norm_kernel,
        out_shape=jax.ShapeDtypeStruct((n, c), x.dtype),
        grid=grid,
        in_specs=[pl.BlockSpec((row_tile, c), lambda i: (i, 0))],
        out_specs=pl.BlockSpec((row_tile, c), lambda i: (i, 0)),
        compiler_params=pltpu.CompilerParams(
            dimension_semantics=("parallel",),
            vmem_limit_bytes=vmem_limit,
        ),
    )(x)


if __name__ == "__main__":
    key = jax.random.PRNGKey(0)

    # Small 2D input consistent with torch.mm in the forward: (N, C)
    N, C = 8, 32
    x = jax.random.normal(key, (N, C), dtype=jnp.float32)
    out = jax.block_until_ready(l2_normalize(x))
    ref = x / jnp.sqrt(jnp.sum(x * x, axis=1, keepdims=True))
    assert out.shape == (N, C)
    assert jnp.allclose(out, ref, atol=1e-5, rtol=1e-5)

    # Ragged, multi-tile case: exercises the cdiv grid with a masked partial
    # last block (no wrapper-side padding or slicing anywhere).
    N2, C2 = 300, 256
    x2 = jax.random.normal(jax.random.PRNGKey(1), (N2, C2), dtype=jnp.float32)
    out2 = jax.block_until_ready(l2_normalize(x2))
    ref2 = x2 / jnp.sqrt(jnp.sum(x2 * x2, axis=1, keepdims=True))
    assert out2.shape == (N2, C2)
    assert jnp.allclose(out2, ref2, atol=1e-5, rtol=1e-5)

    print("KERNEL_OK")
</pallas_src>

<mosaic_0001>
module attributes {stable_mosaic.version = 11 : i64} {
  func.func @_l2_norm_kernel(%arg0: i32, %arg1: memref<8x32xf32, #tpu.memory_space<vmem>>, %arg2: memref<8x32xf32, #tpu.memory_space<vmem>>) attributes {dimension_semantics = [#tpu.dimension_semantics<parallel>], iteration_bounds = array<i64: 1>, scalar_prefetch = 0 : i64, scratch_operands = 0 : i64, tpu.core_type = #tpu.core_type<tc>, window_params = [{transform_indices = @transform_0, window_bounds = array<i64: 8, 32>}, {transform_indices = @transform_1, window_bounds = array<i64: 8, 32>}]} {
    %c0 = arith.constant 0 : index
    %c0_0 = arith.constant 0 : index
    %0 = vector.load %arg1[%c0, %c0_0] : memref<8x32xf32, #tpu.memory_space<vmem>>, vector<8x32xf32>
    %1 = arith.mulf %0, %0 : vector<8x32xf32>
    %cst = arith.constant dense<0.000000e+00> : vector<8xf32>
    %2 = vector.multi_reduction <add>, %1, %cst [1] : vector<8x32xf32> to vector<8xf32>
    %3 = vector.shape_cast %2 : vector<8xf32> to vector<8x1xf32>
    %4 = math.rsqrt %3 : vector<8x1xf32>
    %5 = vector.broadcast %4 : vector<8x1xf32> to vector<8x32xf32>
    %6 = arith.mulf %0, %5 : vector<8x32xf32>
    %c0_1 = arith.constant 0 : index
    %c0_2 = arith.constant 0 : index
    %7 = vector.load %arg2[%c0_1, %c0_2] : memref<8x32xf32, #tpu.memory_space<vmem>>, vector<8x32xf32>
    tpu.vector_store %arg2[%c0_1, %c0_2], %6 {strides = array<i32>} : memref<8x32xf32, #tpu.memory_space<vmem>>, vector<8x32xf32>,
    return
  }
  func.func @transform_0(%arg0: i32) -> (i32, i32) {
    %c0_i32 = arith.constant 0 : i32
    %c0_i32_0 = arith.constant 0 : i32
    return %arg0, %c0_i32 : i32, i32
  }
  func.func @transform_1(%arg0: i32) -> (i32, i32) {
    %c0_i32 = arith.constant 0 : i32
    %c0_i32_0 = arith.constant 0 : i32
    return %arg0, %c0_i32 : i32, i32
  }
}

</mosaic_0001>

<llo_original>
// kernel: tpu_custom_call.1
$region0: #{tpu_custom_call.1}
  #allocation0 [shape = 'u32[]', space=smem, size = 0x4, offset = 0x4, fixed_abs, tag = 'smem constant byte address 0x4 - core index']
  #allocation1 [shape = 'u32[144,128]{1,0:T(1,128)}', space=vmem, size = 0x12000, scoped, tag = 'internal scratch']
  %s0 = inlined_call_operand.hbm [shape: f32[8,32], index: 0, kind: input, shape index: {}]
  %s1 = inlined_call_operand.hbm [shape: f32[8,32], index: 1, kind: output, shape index: {}]
  %s2 = sld [smem:[#allocation0]]
  $region18: #{tpu_custom_call.1} parent=0
    _
  %s4 = ssub.s32 1, %s2
  %s5 = scalar_select 0, %s4, %s2
  $region1: #{tpu_custom_call.1} parent=0
    #allocation2 [shape = 'u8[4096]{0}', space=vmem, size = 0x1000, scoped, tag = 'input window, operand 0, single buffered']
    #allocation3 [shape = 's32[1]{0}', space=sflag, size = 0x4, scoped, tag = 'scoped memory for tpu_custom_call.1']
    #allocation4 [shape = 's32[1]{0}', space=sflag, size = 0x4, scoped, tag = 'scoped memory for tpu_custom_call.1']
    #allocation5 [shape = 'u8[4096]{0}', space=vmem, size = 0x1000, scoped, tag = 'output window, operand 0, single buffered']
    %6 = vsyncpa [#allocation3], 0
    %7 = vsyncpa [#allocation4], 0
    // Predicated region
    $region2: #{tpu_custom_call.1} parent=1 // pred_check
      _
    $region3: #{tpu_custom_call.1} parent=1 // pred_check_branch
      %9 = sbr.rel (0) target = $region5
    $region4: #{tpu_custom_call.1} parent=1 // pred_region
      %s11 = ssub.s32 128, 128
      %12 = vsyncadd [#allocation3], %s11
      %s14 = sshll.u32 [#allocation2], 4
      %s15 = int_to_ptr.vmem [resolvable:$true] %s14
      %17 = dma.hbm_to_vmem [thread:$0]  %s0, 128, %s15, [#allocation3]
    $region5: #{tpu_custom_call.1} parent=1 // pred_fallthru
      _
    // Predicated region
    $region6: #{tpu_custom_call.1} parent=1 // pred_check
      _
    $region7: #{tpu_custom_call.1} parent=1 // pred_check_branch
      %19 = sbr.rel (0) target = $region9
    $region8: #{tpu_custom_call.1} parent=1 // pred_region
      %20 = dma.done [#allocation3], 128
    $region9: #{tpu_custom_call.1} parent=1 // pred_fallthru
      _
    %v21 = vld [vmem:[#allocation2] sm:$0xff]
    %v22 = vmul.f32 %v21, %v21
    %vm23 = vcmask 261120
    %v24 = vsel %vm23, %v22, 0.0
    %25 = vadd.xlane.f32.xlu0 %v24
    %v26 = vpop.xlane.xlu0 %25
    %v27 = vrsqrt.pop %v26
    %v28 = vmul.f32 %v21, %v27
    %29 = vst.msk [vmem:[#allocation5] sm:$0xff] %vm23, %v28
    // Predicated region
    $region10: #{tpu_custom_call.1} parent=1 // pred_check
      _
    $region11: #{tpu_custom_call.1} parent=1 // pred_check_branch
      %31 = sbr.rel (0) target = $region13
    $region12: #{tpu_custom_call.1} parent=1 // pred_region
      %s33 = ssub.s32 128, 128
      %34 = vsyncadd [#allocation4], %s33
      %s36 = sshll.u32 [#allocation5], 4
      %s37 = int_to_ptr.vmem [resolvable:$true] %s36
      %39 = dma.vmem_to_hbm [thread:$0]  %s37, 128, %s1, [#allocation4]
    $region13: #{tpu_custom_call.1} parent=1 // pred_fallthru
      _
    // Predicated region
    $region14: #{tpu_custom_call.1} parent=1 // pred_check
      _
    $region15: #{tpu_custom_call.1} parent=1 // pred_check_branch
      %41 = sbr.rel (0) target = $region17
    $region16: #{tpu_custom_call.1} parent=1 // pred_region
      %42 = dma.done [#allocation4], 128
    $region17: #{tpu_custom_call.1} parent=1 // pred_fallthru
      _
    %43 = vsyncpa [#allocation3], 1
    %44 = vsyncpa [#allocation4], 1

</llo_original>
